<compile_context>
chip_gen: v5e
topology: v5e:2x2
jax: 0.10.0
libtpu: 0.0.40
codegen_flags: <defaults>
</compile_context>

<pallas_src>
import jax
import jax.numpy as jnp
from jax.experimental import pallas as pl
from jax.experimental.pallas import tpu as pltpu


def _round_up(x, m):
    return (x + m - 1) // m * m


def graph_encoder_kernel(v_ref, w_ref, out_ref):
    # v_ref: (TB, N, Dp) packed [h|r|t|0]; w_ref: (1, Dp) packed [w_i|w_k|w_j|0];
    # out_ref: (TB, Dp) packed pooled output (padding lanes stay zero).
    v = v_ref[...]                         # native dtype, lane-dense block
    w = w_ref[...]                         # (1, Dp)

    # Attention logits (TB, N): one VPU multiply + one lane (XLU) reduction.
    # Zero padding lanes of w/v contribute nothing to the sum.
    a = jnp.sum((v * w[:, None, :]).astype(jnp.float32), axis=-1)

    # leaky_relu (slope 0.01), then numerically-stable softmax over N in f32.
    a = jnp.where(a >= 0, a, 0.01 * a)
    m = jnp.max(a, axis=-1, keepdims=True)
    p = jnp.exp(a - m)
    s = jnp.sum(p, axis=-1, keepdims=True)
    inv = pl.reciprocal(s, approx=True)    # EUP slot (otherwise idle)
    inv = inv * (2.0 - s * inv)            # one Newton step -> f32-level accuracy
    alpha = p * inv                        # (TB, N) f32

    # Attention-weighted pooling over nodes (sublane reduction).  The packed
    # layout means this already IS the concatenated [h|r|t] output, so it goes
    # out as one full-width, unmasked, lane-dense store.
    pooled = jnp.sum(alpha[:, :, None] * v, axis=1)   # (TB, Dp) f32
    out_ref[...] = pooled.astype(out_ref.dtype)


# Pipeline-buffer budget (double-buffered in + out slabs) and explicit scoped
# VMEM limit.  32 MiB is >= the default scoped limit on v5e/v6e/v7x and well
# under every generation's physical VMEM (v7x: 64 MiB per TC); the ~8 MiB
# buffer budget leaves >50% headroom for compute temporaries.
_PIPELINE_VMEM_BUDGET = 8 * 1024 * 1024
_VMEM_LIMIT_BYTES = 32 * 1024 * 1024


def graph_encoder(h, r, t, w_i, w_j, w_k, *, block_b=None):
    """h, t: (B, N, De); r: (B, N, Dr); w_i, w_j: (1, De); w_k: (1, Dr)."""
    B, N, De = h.shape
    Dr = r.shape[-1]
    out_dim = 2 * De + Dr
    d_pad = _round_up(out_dim, 128)
    dtype = h.dtype

    # --- Pack features lane-dense: v = [h | r | t | 0] -> (B, N, d_pad).
    # Single fused XLA concat; ideally callers store the triple pre-packed and
    # this becomes free.
    parts = [h, r, t]
    if d_pad != out_dim:
        parts.append(jnp.zeros((B, N, d_pad - out_dim), dtype=dtype))
    v = jnp.concatenate(parts, axis=-1)

    # Packed weight row; segment order must match [h | r | t] -> (w_i, w_k, w_j).
    wparts = [w_i, w_k, w_j]
    if d_pad != out_dim:
        wparts.append(jnp.zeros((1, d_pad - out_dim), dtype=w_i.dtype))
    w = jnp.concatenate(wparts, axis=-1).astype(dtype)

    # --- Batch block TB: padding-aware physical bytes ((8,128)-tiled layout,
    # real itemsize), double-buffered input+output against the pipeline budget.
    itemsize = jnp.dtype(dtype).itemsize
    row_in = _round_up(N, 8) * d_pad * itemsize
    row_out = d_pad * 4                      # f32 output row
    per_row = 2 * (row_in + row_out)         # double-buffered in + out
    tb_budget = max(8, (_PIPELINE_VMEM_BUDGET // per_row) // 8 * 8)

    # Keep >= 4 grid steps for large batches so the "parallel" axis can shard
    # across v7x's two TensorCores and each core still double-buffers.
    b8 = _round_up(B, 8)
    tb_steps = _round_up(-(-b8 // 4), 8)

    if block_b is not None:
        tb = _round_up(max(1, int(block_b)), 8)   # validate caller-provided block
    else:
        tb = max(8, min(tb_budget, tb_steps))
    tb = min(tb, b8)
    if tb >= B:
        tb = B        # one exact block: always layout-legal, no ragged reads
    grid_b = pl.cdiv(B, tb)

    out = pl.pallas_call(
        graph_encoder_kernel,
        out_shape=jax.ShapeDtypeStruct((B, d_pad), jnp.float32),
        grid_spec=pltpu.PrefetchScalarGridSpec(
            num_scalar_prefetch=0,
            grid=(grid_b,),
            in_specs=[
                pl.BlockSpec((tb, N, d_pad), lambda b: (b, 0, 0)),
                pl.BlockSpec((1, d_pad), lambda b: (0, 0)),
            ],
            out_specs=pl.BlockSpec((tb, d_pad), lambda b: (b, 0)),
        ),
        compiler_params=pltpu.CompilerParams(
            dimension_semantics=("parallel",),
            vmem_limit_bytes=_VMEM_LIMIT_BYTES),
    )(v, w)

    return out[:, :out_dim] if d_pad != out_dim else out


def graph_encoder_ref(h, r, t, w_i, w_j, w_k):
    """Pure-JAX reference mirroring the PyTorch forward."""
    e_i = jnp.einsum("bnd,d->bn", h, w_i[0])
    e_j = jnp.einsum("bnd,d->bn", t, w_j[0])
    r_k = jnp.einsum("bnd,d->bn", r, w_k[0])
    a = e_i + e_j + r_k
    a = jnp.where(a >= 0, a, 0.01 * a).astype(jnp.float32)
    alpha = jax.nn.softmax(a, axis=-1)
    v = jnp.concatenate([h, r, t], axis=-1)
    return jnp.einsum("bn,bnd->bd", alpha, v)


if __name__ == "__main__":
    key = jax.random.PRNGKey(0)
    B, N = 2, 8
    entity_dim, relation_dim = 32, 16

    k_h, k_r, k_t, k_wi, k_wj, k_wk = jax.random.split(key, 6)
    h = jax.random.normal(k_h, (B, N, entity_dim), dtype=jnp.float32)
    r = jax.random.normal(k_r, (B, N, relation_dim), dtype=jnp.float32)
    t = jax.random.normal(k_t, (B, N, entity_dim), dtype=jnp.float32)

    # Deterministic "Linear(dim, 1, bias=False)" weights, shape (1, dim) like torch.
    lim_e = 1.0 / (entity_dim ** 0.5)
    lim_r = 1.0 / (relation_dim ** 0.5)
    w_i = jax.random.uniform(k_wi, (1, entity_dim), minval=-lim_e, maxval=lim_e,
                             dtype=jnp.float32)
    w_j = jax.random.uniform(k_wj, (1, entity_dim), minval=-lim_e, maxval=lim_e,
                             dtype=jnp.float32)
    w_k = jax.random.uniform(k_wk, (1, relation_dim), minval=-lim_r, maxval=lim_r,
                             dtype=jnp.float32)

    out = graph_encoder(h, r, t, w_i, w_j, w_k)
    jax.block_until_ready(out)

    ref = graph_encoder_ref(h, r, t, w_i, w_j, w_k)
    assert out.shape == (B, 2 * entity_dim + relation_dim)
    assert jnp.allclose(out, ref, atol=1e-5, rtol=1e-5), "mismatch vs reference"

    print("KERNEL_OK")
</pallas_src>

<mosaic_0001>
module attributes {stable_mosaic.version = 11 : i64} {
  func.func @graph_encoder_kernel(%arg0: i32, %arg1: memref<2x8x128xf32, #tpu.memory_space<vmem>>, %arg2: memref<1x128xf32, #tpu.memory_space<vmem>>, %arg3: memref<2x128xf32, #tpu.memory_space<vmem>>) attributes {dimension_semantics = [#tpu.dimension_semantics<parallel>], iteration_bounds = array<i64: 1>, scalar_prefetch = 0 : i64, scratch_operands = 0 : i64, tpu.core_type = #tpu.core_type<tc>, window_params = [{transform_indices = @transform_0, window_bounds = array<i64: 2, 8, 128>}, {pipeline_mode = #tpu.pipeline_mode<synchronous>, transform_indices = @transform_1, window_bounds = array<i64: 1, 128>}, {transform_indices = @transform_2, window_bounds = array<i64: 2, 128>}]} {
    %c0 = arith.constant 0 : index
    %c0_0 = arith.constant 0 : index
    %c0_1 = arith.constant 0 : index
    %0 = vector.load %arg1[%c0, %c0_0, %c0_1] : memref<2x8x128xf32, #tpu.memory_space<vmem>>, vector<2x8x128xf32>
    %c0_2 = arith.constant 0 : index
    %c0_3 = arith.constant 0 : index
    %1 = vector.load %arg2[%c0_2, %c0_3] : memref<1x128xf32, #tpu.memory_space<vmem>>, vector<1x128xf32>
    %2 = vector.shape_cast %1 : vector<1x128xf32> to vector<1x1x128xf32>
    %3 = vector.broadcast %2 : vector<1x1x128xf32> to vector<2x8x128xf32>
    %4 = arith.mulf %0, %3 : vector<2x8x128xf32>
    %cst = arith.constant dense<0.000000e+00> : vector<2x8xf32>
    %5 = vector.multi_reduction <add>, %4, %cst [2] : vector<2x8x128xf32> to vector<2x8xf32>
    %cst_4 = arith.constant 0.000000e+00 : f32
    %6 = vector.broadcast %cst_4 : f32 to vector<2x8xf32>
    %7 = arith.cmpf oge, %5, %6 : vector<2x8xf32>
    %cst_5 = arith.constant 0.00999999977 : f32
    %8 = vector.broadcast %cst_5 : f32 to vector<2x8xf32>
    %9 = arith.mulf %8, %5 : vector<2x8xf32>
    %10 = arith.select %7, %5, %9 : vector<2x8xi1>, vector<2x8xf32>
    %cst_6 = arith.constant dense<0xFF800000> : vector<2xf32>
    %11 = vector.multi_reduction <maximumf>, %10, %cst_6 [1] : vector<2x8xf32> to vector<2xf32>
    %12 = vector.shape_cast %11 : vector<2xf32> to vector<2x1xf32>
    %13 = vector.broadcast %12 : vector<2x1xf32> to vector<2x8xf32>
    %14 = arith.subf %10, %13 : vector<2x8xf32>
    %15 = math.exp %14 : vector<2x8xf32>
    %cst_7 = arith.constant dense<0.000000e+00> : vector<2xf32>
    %16 = vector.multi_reduction <add>, %15, %cst_7 [1] : vector<2x8xf32> to vector<2xf32>
    %17 = vector.shape_cast %16 : vector<2xf32> to vector<2x1xf32>
    %18 = tpu.reciprocal %17 {approx = true} : vector<2x1xf32> -> vector<2x1xf32>
    %19 = arith.mulf %17, %18 : vector<2x1xf32>
    %cst_8 = arith.constant 2.000000e+00 : f32
    %20 = vector.broadcast %cst_8 : f32 to vector<2x1xf32>
    %21 = arith.subf %20, %19 : vector<2x1xf32>
    %22 = arith.mulf %18, %21 : vector<2x1xf32>
    %23 = vector.broadcast %22 : vector<2x1xf32> to vector<2x8xf32>
    %24 = arith.mulf %15, %23 : vector<2x8xf32>
    %25 = vector.shape_cast %24 : vector<2x8xf32> to vector<2x8x1xf32>
    %26 = vector.broadcast %25 : vector<2x8x1xf32> to vector<2x8x128xf32>
    %27 = arith.mulf %26, %0 : vector<2x8x128xf32>
    %cst_9 = arith.constant dense<0.000000e+00> : vector<2x128xf32>
    %28 = vector.multi_reduction <add>, %27, %cst_9 [1] : vector<2x8x128xf32> to vector<2x128xf32>
    %c0_10 = arith.constant 0 : index
    %c0_11 = arith.constant 0 : index
    %29 = vector.load %arg3[%c0_10, %c0_11] : memref<2x128xf32, #tpu.memory_space<vmem>>, vector<2x128xf32>
    tpu.vector_store %arg3[%c0_10, %c0_11], %28 {strides = array<i32>} : memref<2x128xf32, #tpu.memory_space<vmem>>, vector<2x128xf32>,
    return
  }
  func.func @transform_0(%arg0: i32) -> (i32, i32, i32) {
    %c0_i32 = arith.constant 0 : i32
    %c0_i32_0 = arith.constant 0 : i32
    %c0_i32_1 = arith.constant 0 : i32
    return %arg0, %c0_i32, %c0_i32_0 : i32, i32, i32
  }
  func.func @transform_1(%arg0: i32) -> (i32, i32) {
    %c0_i32 = arith.constant 0 : i32
    %c0_i32_0 = arith.constant 0 : i32
    %c0_i32_1 = arith.constant 0 : i32
    return %c0_i32, %c0_i32_0 : i32, i32
  }
  func.func @transform_2(%arg0: i32) -> (i32, i32) {
    %c0_i32 = arith.constant 0 : i32
    %c0_i32_0 = arith.constant 0 : i32
    return %arg0, %c0_i32 : i32, i32
  }
}

</mosaic_0001>

<llo_original>
// kernel: tpu_custom_call.1
$region0: #{tpu_custom_call.1}
  #allocation0 [shape = 'u32[]', space=smem, size = 0x4, offset = 0x4, fixed_abs, tag = 'smem constant byte address 0x4 - core index']
  #allocation1 [shape = 'u32[72,128]{1,0:T(1,128)}', space=vmem, size = 0x9000, scoped, tag = 'internal scratch']
  %s0 = inlined_call_operand.hbm [shape: f32[2,8,128], index: 0, kind: input, shape index: {}]
  %s1 = inlined_call_operand.hbm [shape: f32[1,128], index: 1, kind: input, shape index: {}]
  %s2 = inlined_call_operand.hbm [shape: f32[2,128], index: 2, kind: output, shape index: {}]
  %s3 = sld [smem:[#allocation0]]
  $region26: #{tpu_custom_call.1} parent=0
    _
  %s5 = ssub.s32 1, %s3
  %s6 = scalar_select 0, %s5, %s3
  $region1: #{tpu_custom_call.1} parent=0
    #allocation2 [shape = 'u8[8192]{0}', space=vmem, size = 0x2000, scoped, tag = 'input window, operand 0, single buffered']
    #allocation3 [shape = 's32[1]{0}', space=sflag, size = 0x4, scoped, tag = 'scoped memory for tpu_custom_call.1']
    #allocation4 [shape = 's32[1]{0}', space=sflag, size = 0x4, scoped, tag = 'scoped memory for tpu_custom_call.1']
    #allocation5 [shape = 'u8[512]{0}', space=vmem, size = 0x400, scoped, tag = 'input window, operand 1, single buffered']
    #allocation6 [shape = 's32[1]{0}', space=sflag, size = 0x4, scoped, tag = 'scoped memory for tpu_custom_call.1']
    #allocation7 [shape = 'u8[1024]{0}', space=vmem, size = 0x400, scoped, tag = 'output window, operand 0, single buffered']
    %7 = vsyncpa [#allocation3], 0
    %8 = vsyncpa [#allocation6], 0
    %9 = vsyncpa [#allocation4], 0
    // Predicated region
    $region2: #{tpu_custom_call.1} parent=1 // pred_check
      _
    $region3: #{tpu_custom_call.1} parent=1 // pred_check_branch
      %11 = sbr.rel (0) target = $region5
    $region4: #{tpu_custom_call.1} parent=1 // pred_region
      %13 = vsyncadd [#allocation3], 0
      %s14 = sshll.u32 %s0, 4
      %s15 = int_to_ptr.hbm [resolvable:$true] %s14
      %s16 = sshll.u32 [#allocation2], 4
      %s17 = int_to_ptr.vmem [resolvable:$true] %s16
      %22 = dma.hbm_to_vmem [thread:$0]  %s15, 256, %s17, [#allocation3], 128, 128, 8
    $region5: #{tpu_custom_call.1} parent=1 // pred_fallthru
      _
    // Predicated region
    $region6: #{tpu_custom_call.1} parent=1 // pred_check
      _
    $region7: #{tpu_custom_call.1} parent=1 // pred_check_branch
      %24 = sbr.rel (0) target = $region9
    $region8: #{tpu_custom_call.1} parent=1 // pred_region
      %26 = vsyncadd [#allocation6], 0
      %s28 = sshll.u32 %s1, 4
      %s29 = int_to_ptr.hbm [resolvable:$true] %s28
      %s30 = sshll.u32 [#allocation5], 4
      %s31 = int_to_ptr.vmem [resolvable:$true] %s30
      %33 = dma.hbm_to_vmem [thread:$0]  %s29, 16, %s31, [#allocation6]
    $region9: #{tpu_custom_call.1} parent=1 // pred_fallthru
      _
    // Predicated region
    $region10: #{tpu_custom_call.1} parent=1 // pred_check
      _
    $region11: #{tpu_custom_call.1} parent=1 // pred_check_branch
      %35 = sbr.rel (0) target = $region13
    $region12: #{tpu_custom_call.1} parent=1 // pred_region
      %37 = dma.done [#allocation3], 256
    $region13: #{tpu_custom_call.1} parent=1 // pred_fallthru
      _
    // Predicated region
    $region14: #{tpu_custom_call.1} parent=1 // pred_check
      _
    $region15: #{tpu_custom_call.1} parent=1 // pred_check_branch
      %39 = sbr.rel (0) target = $region17
    $region16: #{tpu_custom_call.1} parent=1 // pred_region
      %41 = dma.done [#allocation6], 16
    $region17: #{tpu_custom_call.1} parent=1 // pred_fallthru
      _
    %v42 = vld [vmem:[#allocation2] sm:$0xff]
    %v43 = vld [vmem:[#allocation2 + $0x8] sm:$0xff]
    %v44 = vld [vmem:[#allocation5] sm:$0x1]
    %v46 = vperm.slane %v44, 0
    %v48 = vmul.f32 %v42, %v46
    %v49 = vmul.f32 %v43, %v46
    %50 = vadd.xlane.f32.xlu0 %v48
    %v51 = vpop.xlane.xlu0 %50
    %52 = vadd.xlane.f32.xlu0 %v49
    %v53 = vpop.xlane.xlu0 %52
    %vm54 = vcmp.ge.f32.partialorder %v51, 0.0
    %vm55 = vcmp.ge.f32.partialorder %v53, 0.0
    %v56 = vmul.f32 %v51, 0.01
    %v57 = vmul.f32 %v53, 0.01
    %v58 = vsel %vm54, %v51, %v56
    %v59 = vsel %vm55, %v53, %v57
    %v62 = vlaneseq
    %v63 = vand.u32 %v62, 127
    %v64 = vperm.slane %v58, %v63
    %v65 = vperm.slane %v59, %v63
    %vm66 = vcmask 1041409
    %v67 = vsel %vm66, %v65, %v64
    %vm69 = vcmask 58368
    %v70 = vsel %vm69, %v67, -inf
    %71 = vmax.xlane.f32.xlu0 %v70
    %v72 = vpop.xlane.xlu0 %71
    %v74 = vperm.slane %v72, 0
    %v75 = vperm.slane %v72, 1
    %v78 = vsub.f32 %v58, %v74
    %v79 = vsub.f32 %v59, %v75
    %v80 = vmul.f32 %v78, 1.442695
    %v81 = vpow.pop %v80
    %v82 = vmul.f32 %v79, 1.442695
    %v83 = vpow.pop %v82
    %86 = vset.pattern.permute.xlu0 0
    %87 = vperm.xlu0 %86, %v81
    %v88 = vpop.permute.xlu0 %87
    %89 = vset.pattern.permute.xlu0 0
    %90 = vperm.xlu0 %89, %v83
    %v91 = vpop.permute.xlu0 %90
    %v92 = vperm.slane %v88, %v63
    %v93 = vperm.slane %v91, %v63
    %v94 = vsel %vm66, %v93, %v92
    %v96 = vsel %vm69, %v94, 0.0
    %97 = vadd.xlane.f32.xlu0 %v96
    %v98 = vpop.xlane.xlu0 %97
    %v99 = vrcp.pop %v98
    %v100 = vmul.f32 %v98, %v99
    %v101 = vsub.f32 2.0, %v100
    %v102 = vmul.f32 %v99, %v101
    %v104 = vperm.slane %v102, 0
    %v105 = vperm.slane %v102, 1
    %v108 = vmul.f32 %v81, %v104
    %v109 = vmul.f32 %v83, %v105
    %111 = vset.pattern.permute.xlu0 0
    %112 = vperm.xlu0 %111, %v108
    %v113 = vpop.permute.xlu0 %112
    %116 = vset.pattern.permute.xlu0 0
    %117 = vperm.xlu0 %116, %v109
    %v118 = vpop.permute.xlu0 %117
    %v120 = vmul.f32 %v113, %v42
    %v121 = vmul.f32 %v118, %v43
    %v122 = vrot.slane %v120, 4
    %v123 = vadd.f32 %v120, %v122
    %v124 = vrot.slane %v123, 2
    %v125 = vadd.f32 %v123, %v124
    %v126 = vrot.slane %v125, 1
    %v127 = vadd.f32 %v125, %v126
    %v128 = vrot.slane %v121, 4
    %v129 = vadd.f32 %v121, %v128
    %v130 = vrot.slane %v129, 2
    %v131 = vadd.f32 %v129, %v130
    %v132 = vrot.slane %v131, 1
    %v133 = vadd.f32 %v131, %v132
    %v136 = vsel %vm66, %v133, %v127
    %138 = vst [vmem:[#allocation7] sm:$0x3] %v136
    // Predicated region
    $region18: #{tpu_custom_call.1} parent=1 // pred_check
      _
    $region19: #{tpu_custom_call.1} parent=1 // pred_check_branch
      %140 = sbr.rel (0) target = $region21
    $region20: #{tpu_custom_call.1} parent=1 // pred_region
      %142 = vsyncadd [#allocation4], 0
      %s144 = sshll.u32 [#allocation7], 4
      %s145 = int_to_ptr.vmem [resolvable:$true] %s144
      %s146 = sshll.u32 %s2, 4
      %s147 = int_to_ptr.hbm [resolvable:$true] %s146
      %149 = dma.vmem_to_hbm [thread:$0]  %s145, 32, %s147, [#allocation4]
    $region21: #{tpu_custom_call.1} parent=1 // pred_fallthru
      _
    // Predicated region
    $region22: #{tpu_custom_call.1} parent=1 // pred_check
      _
    $region23: #{tpu_custom_call.1} parent=1 // pred_check_branch
      %151 = sbr.rel (0) target = $region25
    $region24: #{tpu_custom_call.1} parent=1 // pred_region
      %153 = dma.done [#allocation4], 32
    $region25: #{tpu_custom_call.1} parent=1 // pred_fallthru
      _
    %154 = vsyncpa [#allocation3], 1
    %155 = vsyncpa [#allocation6], 1
    %156 = vsyncpa [#allocation4], 1

</llo_original>
